<compile_context>
chip_gen: v7x
topology: tpu7x:2x2x1
jax: 0.10.0
libtpu: 0.0.40
codegen_flags: <defaults>
</compile_context>

<pallas_src>
import functools

import jax
import jax.numpy as jnp
from jax.experimental import pallas as pl
from jax.experimental.pallas import tpu as pltpu


# ----------------------------------------------------------------------------- helpers

def _round_up(x, m):
    return ((x + m - 1) // m) * m


def _pad_to(a, shape):
    pads = [(0, s - d) for d, s in zip(a.shape, shape)]
    if all(p == (0, 0) for p in pads):
        return a
    return jnp.pad(a, pads)


def _weight_bytes(params):
    return sum(int(params[k].size) * params[k].dtype.itemsize
               for k in ("w_rec_t", "w_in_t", "w_out_t", "b_rec", "b_out"))


def _vmem_limit_bytes(params, tb, tt, hp, ip, op):
    # resident weights + double-buffered streamed blocks + carried-state scratch (all f32 blocks)
    blk = 4 * tb * (hp + tt * ip + tt * op + hp)
    est = _weight_bytes(params) + 2 * 2 * blk + 4 * tb * hp
    # Stay under v7x's 64 MiB physical VMEM; never request less than the 32 MiB default.
    return int(min(max(2 * est, 32 * 1024 * 1024), 56 * 1024 * 1024))


def prepare_rnn_params(w_in, w_rec, w_out, b_rec, b_out, weight_dtype=jnp.float32):
    """Transpose / pad the weights once (hoisted out of the step/rollout path).

    w_in: (n_h, n_in), w_rec: (n_h, n_h), w_out: (n_out, n_h), b_rec: (n_h,), b_out: (n_out,)
    weight_dtype: jnp.float32 (exact) or jnp.bfloat16 (faster MXU on v6e/v7x, ~1e-2 deviation).
    """
    w_in = jnp.asarray(w_in, jnp.float32)
    w_rec = jnp.asarray(w_rec, jnp.float32)
    w_out = jnp.asarray(w_out, jnp.float32)
    b_rec = jnp.asarray(b_rec, jnp.float32)
    b_out = jnp.asarray(b_out, jnp.float32)

    n_h, n_in = w_in.shape
    n_out = w_out.shape[0]
    hp = _round_up(n_h, 128)
    ip = _round_up(n_in, 128)
    op = _round_up(n_out, 128)

    return dict(
        w_rec_t=_pad_to(w_rec.T, (hp, hp)).astype(weight_dtype),   # for state @ W_rec.T
        w_in_t=_pad_to(w_in.T, (ip, hp)).astype(weight_dtype),     # for x @ W_in.T
        w_out_t=_pad_to(w_out.T, (hp, op)).astype(weight_dtype),   # for state @ W_out.T
        b_rec=_pad_to(b_rec.reshape(1, n_h), (1, hp)),              # (1, hp), f32
        b_out=_pad_to(b_out.reshape(1, n_out), (1, op)),            # (1, op), f32
        n_in=n_in, n_h=n_h, n_out=n_out, Hp=hp, Ip=ip, Op=op)


# ----------------------------------------------------------------------------- single step

def _rnn_step_kernel(state_ref, x_ref, w_rec_ref, w_in_ref, b_rec_ref, w_out_ref, b_out_ref,
                     new_state_ref, out_ref, *, alpha, activation):
    state = state_ref[...]                                          # (TB, Hp) f32
    wdt = w_rec_ref.dtype
    h = (jnp.dot(state.astype(wdt), w_rec_ref[...], preferred_element_type=jnp.float32)
         + jnp.dot(x_ref[...].astype(wdt), w_in_ref[...], preferred_element_type=jnp.float32)
         + b_rec_ref[...])                                          # (TB, Hp)

    act = jnp.tanh(h) if activation == "tanh" else jnp.maximum(h, 0.0)

    if alpha == 1.0:                                                # trace-time specialization
        new_state = act
    else:
        new_state = (1.0 - alpha) * state + alpha * act

    new_state_ref[...] = new_state
    out_ref[...] = (jnp.dot(new_state.astype(wdt), w_out_ref[...],
                            preferred_element_type=jnp.float32)
                    + b_out_ref[...])


def rnn_step(state, x, params, activation="tanh", alpha=1.0, batch_tile=None):
    """One forward step of Torch_RNN. state: (B, n_h), x: (B, n_in). Returns (new_state, output)."""
    B = state.shape[0]
    hp, ip, op = params["Hp"], params["Ip"], params["Op"]
    n_h, n_out = params["n_h"], params["n_out"]

    tb = batch_tile if batch_tile is not None else min(512, _round_up(B, 8))
    bp = _round_up(B, tb)

    state_p = _pad_to(jnp.asarray(state, jnp.float32), (bp, hp))
    x_p = _pad_to(jnp.asarray(x, jnp.float32), (bp, ip))

    kernel = functools.partial(_rnn_step_kernel, alpha=float(alpha), activation=activation)

    new_state_p, out_p = pl.pallas_call(
        kernel,
        out_shape=(jax.ShapeDtypeStruct((bp, hp), jnp.float32),
                   jax.ShapeDtypeStruct((bp, op), jnp.float32)),
        grid=(bp // tb,),
        in_specs=[
            pl.BlockSpec((tb, hp), lambda i: (i, 0)),               # state, tiled over batch
            pl.BlockSpec((tb, ip), lambda i: (i, 0)),               # x, tiled over batch
            pl.BlockSpec((hp, hp), lambda i: (0, 0)),               # W_rec^T, VMEM-resident
            pl.BlockSpec((ip, hp), lambda i: (0, 0)),               # W_in^T,  VMEM-resident
            pl.BlockSpec((1, hp), lambda i: (0, 0)),
            pl.BlockSpec((hp, op), lambda i: (0, 0)),               # W_out^T, VMEM-resident
            pl.BlockSpec((1, op), lambda i: (0, 0)),
        ],
        out_specs=(pl.BlockSpec((tb, hp), lambda i: (i, 0)),
                   pl.BlockSpec((tb, op), lambda i: (i, 0))),
        compiler_params=pltpu.CompilerParams(
            dimension_semantics=("parallel",),
            vmem_limit_bytes=_vmem_limit_bytes(params, tb, 1, hp, ip, op)),
    )(state_p, x_p, params["w_rec_t"], params["w_in_t"], params["b_rec"],
      params["w_out_t"], params["b_out"])

    return new_state_p[:B, :n_h], out_p[:B, :n_out]


# ----------------------------------------------------------------------------- fused rollout

def _rnn_seq_kernel(state0_ref, x_ref, w_rec_ref, w_in_ref, b_rec_ref, w_out_ref, b_out_ref,
                    final_state_ref, out_ref, state_scratch, *, alpha, activation, tt, seq_len):
    tblk = pl.program_id(1)

    @pl.when(tblk == 0)
    def _():                                                        # load carried state once per batch tile
        state_scratch[...] = state0_ref[...]

    wdt = w_rec_ref.dtype
    w_rec = w_rec_ref[...]
    w_in = w_in_ref[...]
    w_out = w_out_ref[...]
    b_rec = b_rec_ref[...]
    b_out = b_out_ref[...]

    mask_tail = (seq_len % tt) != 0                                 # static (trace-time) flag

    # Statically unrolled loop over the tt time steps of this block: step i's output matmul
    # overlaps with step i+1's recurrent matmul on the MXU.
    for i in range(tt):
        state = state_scratch[...]
        h = (jnp.dot(state.astype(wdt), w_rec, preferred_element_type=jnp.float32)
             + jnp.dot(x_ref[i].astype(wdt), w_in, preferred_element_type=jnp.float32)
             + b_rec)
        act = jnp.tanh(h) if activation == "tanh" else jnp.maximum(h, 0.0)
        if alpha == 1.0:
            new_state = act
        else:
            new_state = (1.0 - alpha) * state + alpha * act
        if mask_tail:                                               # freeze state on padded trailing steps
            valid = (tblk * tt + i) < seq_len
            new_state = jnp.where(valid, new_state, state)
        state_scratch[...] = new_state                              # carry state in VMEM across steps
        out_ref[i] = (jnp.dot(new_state.astype(wdt), w_out,
                              preferred_element_type=jnp.float32)
                      + b_out)

    @pl.when(tblk == pl.num_programs(1) - 1)
    def _():
        final_state_ref[...] = state_scratch[...]


def rnn_rollout(state0, x_seq, params, activation="tanh", alpha=1.0,
                batch_tile=None, seq_tile=None):
    """Apply the Torch_RNN forward step over a sequence. x_seq: (T, B, n_in).
    Returns (final_state (B, n_h), outputs (T, B, n_out)), matching a Python loop over forward()."""
    T, B, _ = x_seq.shape
    hp, ip, op = params["Hp"], params["Ip"], params["Op"]
    n_h, n_out = params["n_h"], params["n_out"]

    tb = batch_tile if batch_tile is not None else min(512, _round_up(B, 8))
    bp = _round_up(B, tb)
    tt = seq_tile if seq_tile is not None else min(T, 8)
    tp = _round_up(T, tt)

    state0_p = _pad_to(jnp.asarray(state0, jnp.float32), (bp, hp))
    x_seq_p = _pad_to(jnp.asarray(x_seq, jnp.float32), (tp, bp, ip))

    kernel = functools.partial(_rnn_seq_kernel, alpha=float(alpha), activation=activation,
                               tt=tt, seq_len=T)

    final_state_p, out_seq_p = pl.pallas_call(
        kernel,
        out_shape=(jax.ShapeDtypeStruct((bp, hp), jnp.float32),
                   jax.ShapeDtypeStruct((tp, bp, op), jnp.float32)),
        grid=(bp // tb, tp // tt),                                  # batch parallel, time arbitrary (innermost)
        in_specs=[
            pl.BlockSpec((tb, hp), lambda b, t: (b, 0)),            # initial state
            pl.BlockSpec((tt, tb, ip), lambda b, t: (t, b, 0)),     # x chunk (tt steps), streamed
            pl.BlockSpec((hp, hp), lambda b, t: (0, 0)),            # W_rec^T, resident across steps
            pl.BlockSpec((ip, hp), lambda b, t: (0, 0)),            # W_in^T,  resident across steps
            pl.BlockSpec((1, hp), lambda b, t: (0, 0)),
            pl.BlockSpec((hp, op), lambda b, t: (0, 0)),            # W_out^T, resident across steps
            pl.BlockSpec((1, op), lambda b, t: (0, 0)),
        ],
        out_specs=(pl.BlockSpec((tb, hp), lambda b, t: (b, 0)),         # final state (written last step)
                   pl.BlockSpec((tt, tb, op), lambda b, t: (t, b, 0))),  # per-step outputs
        scratch_shapes=[pltpu.VMEM((tb, hp), jnp.float32)],          # carried hidden state
        compiler_params=pltpu.CompilerParams(
            dimension_semantics=("parallel", "arbitrary"),
            vmem_limit_bytes=_vmem_limit_bytes(params, tb, tt, hp, ip, op)),
    )(state0_p, x_seq_p, params["w_rec_t"], params["w_in_t"], params["b_rec"],
      params["w_out_t"], params["b_out"])

    return final_state_p[:B, :n_h], out_seq_p[:T, :B, :n_out]


# ----------------------------------------------------------------------------- reference + test

def _reference_step(state, x, w_in, w_rec, w_out, b_rec, b_out, activation, alpha):
    h = state @ w_rec.T + x @ w_in.T + b_rec
    act = jnp.tanh(h) if activation == "tanh" else jnp.maximum(h, 0.0)
    new_state = (1 - alpha) * state + alpha * act
    output = new_state @ w_out.T + b_out
    return new_state, output


def _reference_rollout(state, x_seq, w_in, w_rec, w_out, b_rec, b_out, activation, alpha):
    outs = []
    for t in range(x_seq.shape[0]):
        state, o = _reference_step(state, x_seq[t], w_in, w_rec, w_out, b_rec, b_out,
                                   activation, alpha)
        outs.append(o)
    return state, jnp.stack(outs, axis=0)


if __name__ == "__main__":
    B, n_in, n_h, n_out, T = 4, 16, 32, 8, 8
    alpha = 0.5
    activation = "tanh"

    key = jax.random.PRNGKey(0)
    ks = jax.random.split(key, 9)
    state = jax.random.normal(ks[0], (B, n_h), jnp.float32)
    x = jax.random.normal(ks[1], (B, n_in), jnp.float32)
    w_in = jax.random.normal(ks[2], (n_h, n_in), jnp.float32) * 0.1
    w_rec = jax.random.normal(ks[3], (n_h, n_h), jnp.float32) * 0.1
    w_out = jax.random.normal(ks[4], (n_out, n_h), jnp.float32) * 0.1
    b_rec = jax.random.normal(ks[5], (n_h,), jnp.float32) * 0.1
    b_out = jax.random.normal(ks[6], (n_out,), jnp.float32) * 0.1
    x_seq = jax.random.normal(ks[7], (T, B, n_in), jnp.float32)
    x_seq2 = jax.random.normal(ks[8], (10, B, n_in), jnp.float32)   # ragged-tail case

    # Weight prep is done once, outside the step path.
    params = prepare_rnn_params(w_in, w_rec, w_out, b_rec, b_out)

    # --- single step (== Torch_RNN.forward), tanh / alpha=0.5 ---
    new_state, output = rnn_step(state, x, params, activation=activation, alpha=alpha)
    jax.block_until_ready((new_state, output))
    ref_state, ref_out = _reference_step(state, x, w_in, w_rec, w_out, b_rec, b_out,
                                         activation, alpha)
    assert jnp.allclose(new_state, ref_state, atol=1e-4, rtol=1e-4)
    assert jnp.allclose(output, ref_out, atol=1e-4, rtol=1e-4)

    # --- single step, relu / alpha=1.0 (exercises the specialized blend-free path) ---
    ns_r, out_r = rnn_step(state, x, params, activation="relu", alpha=1.0)
    jax.block_until_ready((ns_r, out_r))
    ref_ns_r, ref_out_r = _reference_step(state, x, w_in, w_rec, w_out, b_rec, b_out,
                                          "relu", 1.0)
    assert jnp.allclose(ns_r, ref_ns_r, atol=1e-4, rtol=1e-4)
    assert jnp.allclose(out_r, ref_out_r, atol=1e-4, rtol=1e-4)

    # --- fused sequence rollout (forward applied T times inside one kernel) ---
    final_state, out_seq = rnn_rollout(state, x_seq, params,
                                       activation=activation, alpha=alpha)
    jax.block_until_ready((final_state, out_seq))
    ref_fs, ref_os = _reference_rollout(state, x_seq, w_in, w_rec, w_out, b_rec, b_out,
                                        activation, alpha)
    assert jnp.allclose(final_state, ref_fs, atol=1e-4, rtol=1e-4)
    assert jnp.allclose(out_seq, ref_os, atol=1e-4, rtol=1e-4)

    # --- rollout with T not divisible by seq_tile (exercises padded-step masking) ---
    final_state2, out_seq2 = rnn_rollout(state, x_seq2, params,
                                         activation=activation, alpha=alpha, seq_tile=4)
    jax.block_until_ready((final_state2, out_seq2))
    ref_fs2, ref_os2 = _reference_rollout(state, x_seq2, w_in, w_rec, w_out, b_rec, b_out,
                                          activation, alpha)
    assert jnp.allclose(final_state2, ref_fs2, atol=1e-4, rtol=1e-4)
    assert jnp.allclose(out_seq2, ref_os2, atol=1e-4, rtol=1e-4)

    print("KERNEL_OK")
</pallas_src>

<mosaic_0001>
module attributes {stable_mosaic.version = 11 : i64} {
  func.func @_rnn_step_kernel(%arg0: i32, %arg1: memref<8x128xf32, #tpu.memory_space<vmem>>, %arg2: memref<8x128xf32, #tpu.memory_space<vmem>>, %arg3: memref<128x128xf32, #tpu.memory_space<vmem>>, %arg4: memref<128x128xf32, #tpu.memory_space<vmem>>, %arg5: memref<1x128xf32, #tpu.memory_space<vmem>>, %arg6: memref<128x128xf32, #tpu.memory_space<vmem>>, %arg7: memref<1x128xf32, #tpu.memory_space<vmem>>, %arg8: memref<8x128xf32, #tpu.memory_space<vmem>>, %arg9: memref<8x128xf32, #tpu.memory_space<vmem>>) attributes {dimension_semantics = [#tpu.dimension_semantics<parallel>], iteration_bounds = array<i64: 1>, scalar_prefetch = 0 : i64, scratch_operands = 0 : i64, tpu.core_type = #tpu.core_type<tc>, window_params = [{transform_indices = @transform_0, window_bounds = array<i64: 8, 128>}, {transform_indices = @transform_1, window_bounds = array<i64: 8, 128>}, {pipeline_mode = #tpu.pipeline_mode<synchronous>, transform_indices = @transform_2, window_bounds = array<i64: 128, 128>}, {pipeline_mode = #tpu.pipeline_mode<synchronous>, transform_indices = @transform_3, window_bounds = array<i64: 128, 128>}, {pipeline_mode = #tpu.pipeline_mode<synchronous>, transform_indices = @transform_4, window_bounds = array<i64: 1, 128>}, {pipeline_mode = #tpu.pipeline_mode<synchronous>, transform_indices = @transform_5, window_bounds = array<i64: 128, 128>}, {pipeline_mode = #tpu.pipeline_mode<synchronous>, transform_indices = @transform_6, window_bounds = array<i64: 1, 128>}, {transform_indices = @transform_7, window_bounds = array<i64: 8, 128>}, {transform_indices = @transform_8, window_bounds = array<i64: 8, 128>}]} {
    %c0 = arith.constant 0 : index
    %c0_0 = arith.constant 0 : index
    %0 = vector.load %arg1[%c0, %c0_0] : memref<8x128xf32, #tpu.memory_space<vmem>>, vector<8x128xf32>
    %c0_1 = arith.constant 0 : index
    %c0_2 = arith.constant 0 : index
    %1 = vector.load %arg3[%c0_1, %c0_2] : memref<128x128xf32, #tpu.memory_space<vmem>>, vector<128x128xf32>
    %cst = arith.constant dense<0.000000e+00> : vector<8x128xf32>
    %2 = tpu.matmul %0, %1, %cst {dimension_numbers = #tpu.dot_dimension_numbers<[1], [0], [0], [1], [0, 0, 1, 1], [], []>} : vector<8x128xf32>, vector<128x128xf32>, vector<8x128xf32> -> vector<8x128xf32>
    %c0_3 = arith.constant 0 : index
    %c0_4 = arith.constant 0 : index
    %3 = vector.load %arg2[%c0_3, %c0_4] : memref<8x128xf32, #tpu.memory_space<vmem>>, vector<8x128xf32>
    %c0_5 = arith.constant 0 : index
    %c0_6 = arith.constant 0 : index
    %4 = vector.load %arg4[%c0_5, %c0_6] : memref<128x128xf32, #tpu.memory_space<vmem>>, vector<128x128xf32>
    %cst_7 = arith.constant dense<0.000000e+00> : vector<8x128xf32>
    %5 = tpu.matmul %3, %4, %cst_7 {dimension_numbers = #tpu.dot_dimension_numbers<[1], [0], [0], [1], [0, 0, 1, 1], [], []>} : vector<8x128xf32>, vector<128x128xf32>, vector<8x128xf32> -> vector<8x128xf32>
    %6 = arith.addf %2, %5 : vector<8x128xf32>
    %c0_8 = arith.constant 0 : index
    %c0_9 = arith.constant 0 : index
    %7 = vector.load %arg5[%c0_8, %c0_9] : memref<1x128xf32, #tpu.memory_space<vmem>>, vector<1x128xf32>
    %8 = vector.broadcast %7 : vector<1x128xf32> to vector<8x128xf32>
    %9 = arith.addf %6, %8 : vector<8x128xf32>
    %10 = math.tanh %9 : vector<8x128xf32>
    %cst_10 = arith.constant 5.000000e-01 : f32
    %11 = vector.broadcast %cst_10 : f32 to vector<8x128xf32>
    %12 = arith.mulf %11, %0 : vector<8x128xf32>
    %cst_11 = arith.constant 5.000000e-01 : f32
    %13 = vector.broadcast %cst_11 : f32 to vector<8x128xf32>
    %14 = arith.mulf %13, %10 : vector<8x128xf32>
    %15 = arith.addf %12, %14 : vector<8x128xf32>
    %c0_12 = arith.constant 0 : index
    %c0_13 = arith.constant 0 : index
    %16 = vector.load %arg8[%c0_12, %c0_13] : memref<8x128xf32, #tpu.memory_space<vmem>>, vector<8x128xf32>
    tpu.vector_store %arg8[%c0_12, %c0_13], %15 {strides = array<i32>} : memref<8x128xf32, #tpu.memory_space<vmem>>, vector<8x128xf32>,
    %c0_14 = arith.constant 0 : index
    %c0_15 = arith.constant 0 : index
    %17 = vector.load %arg6[%c0_14, %c0_15] : memref<128x128xf32, #tpu.memory_space<vmem>>, vector<128x128xf32>
    %cst_16 = arith.constant dense<0.000000e+00> : vector<8x128xf32>
    %18 = tpu.matmul %15, %17, %cst_16 {dimension_numbers = #tpu.dot_dimension_numbers<[1], [0], [0], [1], [0, 0, 1, 1], [], []>} : vector<8x128xf32>, vector<128x128xf32>, vector<8x128xf32> -> vector<8x128xf32>
    %c0_17 = arith.constant 0 : index
    %c0_18 = arith.constant 0 : index
    %19 = vector.load %arg7[%c0_17, %c0_18] : memref<1x128xf32, #tpu.memory_space<vmem>>, vector<1x128xf32>
    %20 = vector.broadcast %19 : vector<1x128xf32> to vector<8x128xf32>
    %21 = arith.addf %18, %20 : vector<8x128xf32>
    %c0_19 = arith.constant 0 : index
    %c0_20 = arith.constant 0 : index
    %22 = vector.load %arg9[%c0_19, %c0_20] : memref<8x128xf32, #tpu.memory_space<vmem>>, vector<8x128xf32>
    tpu.vector_store %arg9[%c0_19, %c0_20], %21 {strides = array<i32>} : memref<8x128xf32, #tpu.memory_space<vmem>>, vector<8x128xf32>,
    return
  }
  func.func @transform_0(%arg0: i32) -> (i32, i32) {
    %c0_i32 = arith.constant 0 : i32
    %c0_i32_0 = arith.constant 0 : i32
    return %arg0, %c0_i32 : i32, i32
  }
  func.func @transform_1(%arg0: i32) -> (i32, i32) {
    %c0_i32 = arith.constant 0 : i32
    %c0_i32_0 = arith.constant 0 : i32
    return %arg0, %c0_i32 : i32, i32
  }
  func.func @transform_2(%arg0: i32) -> (i32, i32) {
    %c0_i32 = arith.constant 0 : i32
    %c0_i32_0 = arith.constant 0 : i32
    %c0_i32_1 = arith.constant 0 : i32
    return %c0_i32, %c0_i32_0 : i32, i32
  }
  func.func @transform_3(%arg0: i32) -> (i32, i32) {
    %c0_i32 = arith.constant 0 : i32
    %c0_i32_0 = arith.constant 0 : i32
    %c0_i32_1 = arith.constant 0 : i32
    return %c0_i32, %c0_i32_0 : i32, i32
  }
  func.func @transform_4(%arg0: i32) -> (i32, i32) {
    %c0_i32 = arith.constant 0 : i32
    %c0_i32_0 = arith.constant 0 : i32
    %c0_i32_1 = arith.constant 0 : i32
    return %c0_i32, %c0_i32_0 : i32, i32
  }
  func.func @transform_5(%arg0: i32) -> (i32, i32) {
    %c0_i32 = arith.constant 0 : i32
    %c0_i32_0 = arith.constant 0 : i32
    %c0_i32_1 = arith.constant 0 : i32
    return %c0_i32, %c0_i32_0 : i32, i32
  }
  func.func @transform_6(%arg0: i32) -> (i32, i32) {
    %c0_i32 = arith.constant 0 : i32
    %c0_i32_0 = arith.constant 0 : i32
    %c0_i32_1 = arith.constant 0 : i32
    return %c0_i32, %c0_i32_0 : i32, i32
  }
  func.func @transform_7(%arg0: i32) -> (i32, i32) {
    %c0_i32 = arith.constant 0 : i32
    %c0_i32_0 = arith.constant 0 : i32
    return %arg0, %c0_i32 : i32, i32
  }
  func.func @transform_8(%arg0: i32) -> (i32, i32) {
    %c0_i32 = arith.constant 0 : i32
    %c0_i32_0 = arith.constant 0 : i32
    return %arg0, %c0_i32 : i32, i32
  }
}

</mosaic_0001>

<llo_original>
// kernel: tpu_custom_call.1
$region0: #{tpu_custom_call.1}
  #allocation0 [shape = 'u32[]', space=smem, size = 0x4, offset = 0x4, fixed_abs, tag = 'smem constant byte address 0x4 - core index']
  #allocation1 [shape = 'u32[144,128]{1,0:T(1,128)}', space=vmem, size = 0x12000, scoped, tag = 'internal scratch']
  %s0 = inlined_call_operand.hbm [shape: f32[8,128], index: 0, kind: input, shape index: {}]
  %s1 = inlined_call_operand.hbm [shape: f32[8,128], index: 1, kind: input, shape index: {}]
  %s2 = inlined_call_operand.hbm [shape: f32[128,128], index: 2, kind: input, shape index: {}]
  %s3 = inlined_call_operand.hbm [shape: f32[128,128], index: 3, kind: input, shape index: {}]
  %s4 = inlined_call_operand.vmem [shape: f32[1,128], index: 4, kind: input, shape index: {}]
  %s5 = inlined_call_operand.hbm [shape: f32[128,128], index: 5, kind: input, shape index: {}]
  %s6 = inlined_call_operand.vmem [shape: f32[1,128], index: 6, kind: input, shape index: {}]
  %s7 = inlined_call_operand.hbm [shape: f32[8,128], index: 7, kind: output, shape index: {0}]
  %s8 = inlined_call_operand.hbm [shape: f32[8,128], index: 8, kind: output, shape index: {1}]
  %9 = xla_tuple %s7, %s8
  %s10 = sld [smem:[#allocation0]]
  $region66: #{tpu_custom_call.1} parent=0
    _
  %s12 = ssub.s32 1, %s10
  %s13 = scalar_select 0, %s12, %s10
  $region1: #{tpu_custom_call.1} parent=0
    #allocation2 [shape = 'u8[4096]{0}', space=vmem, size = 0x1000, scoped, tag = 'input window, operand 0, single buffered']
    #allocation3 [shape = 's32[1]{0}', space=sflag, size = 0x4, scoped, tag = 'scoped memory for tpu_custom_call.1']
    #allocation4 [shape = 's32[1]{0}', space=sflag, size = 0x4, scoped, tag = 'scoped memory for tpu_custom_call.1']
    #allocation5 [shape = 'u8[4096]{0}', space=vmem, size = 0x1000, scoped, tag = 'input window, operand 1, single buffered']
    #allocation6 [shape = 's32[1]{0}', space=sflag, size = 0x4, scoped, tag = 'scoped memory for tpu_custom_call.1']
    #allocation7 [shape = 'u8[65536]{0}', space=vmem, size = 0x10000, scoped, tag = 'input window, operand 2, single buffered']
    #allocation8 [shape = 'u8[65536]{0}', space=vmem, size = 0x10000, scoped, tag = 'input window, operand 3, single buffered']
    #allocation9 [shape = 's32[1]{0}', space=sflag, size = 0x4, scoped, tag = 'scoped memory for tpu_custom_call.1']
    #allocation10 [shape = 'u8[65536]{0}', space=vmem, size = 0x10000, scoped, tag = 'input window, operand 5, single buffered']
    #allocation11 [shape = 'u8[4096]{0}', space=vmem, size = 0x1000, scoped, tag = 'output window, operand 0, single buffered']
    #allocation12 [shape = 'u8[4096]{0}', space=vmem, size = 0x1000, scoped, tag = 'output window, operand 1, single buffered']
    #allocation13 [shape = 's32[1]{0}', space=sflag, size = 0x4, scoped, tag = 'scoped memory for tpu_custom_call.1']
    %14 = vsyncpa [#allocation3], 0
    %15 = vsyncpa [#allocation6], 0
    %16 = vsyncpa [#allocation9], 0
    %17 = vsyncpa [#allocation4], 0
    %18 = vsyncpa [#allocation13], 0
    // Predicated region
    $region2: #{tpu_custom_call.1} parent=1 // pred_check
      _
    $region3: #{tpu_custom_call.1} parent=1 // pred_check_branch
      %20 = sbr.rel (0) target = $region5
    $region4: #{tpu_custom_call.1} parent=1 // pred_region
      %s22 = ssub.s32 128, 128
      %23 = vsyncadd [#allocation3], %s22
      %s25 = sshll.u32 [#allocation2], 4
      %s26 = int_to_ptr.vmem [resolvable:$true] %s25
      %28 = dma.hbm_to_vmem [thread:$0]  %s0, 128, %s26, [#allocation3]
    $region5: #{tpu_custom_call.1} parent=1 // pred_fallthru
      _
    // Predicated region
    $region6: #{tpu_custom_call.1} parent=1 // pred_check
      _
    $region7: #{tpu_custom_call.1} parent=1 // pred_check_branch
      %30 = sbr.rel (0) target = $region9
    $region8: #{tpu_custom_call.1} parent=1 // pred_region
      %s32 = ssub.s32 128, 128
      %33 = vsyncadd [#allocation6], %s32
      %s35 = sshll.u32 [#allocation5], 4
      %s36 = int_to_ptr.vmem [resolvable:$true] %s35
      %38 = dma.hbm_to_vmem [thread:$0]  %s1, 128, %s36, [#allocation6]
    $region9: #{tpu_custom_call.1} parent=1 // pred_fallthru
      _
    // Predicated region
    $region10: #{tpu_custom_call.1} parent=1 // pred_check
      _
    $region11: #{tpu_custom_call.1} parent=1 // pred_check_branch
      %40 = sbr.rel (0) target = $region13
    $region12: #{tpu_custom_call.1} parent=1 // pred_region
      %s42 = ssub.s32 2048, 2048
      %43 = vsyncadd [#allocation6], %s42
      %s44 = sshll.u32 [#allocation7], 4
      %s45 = int_to_ptr.vmem [resolvable:$true] %s44
      %50 = dma.hbm_to_vmem [thread:$0]  %s2, 2048, %s45, [#allocation6], 128, 128, 8
    $region13: #{tpu_custom_call.1} parent=1 // pred_fallthru
      _
    // Predicated region
    $region14: #{tpu_custom_call.1} parent=1 // pred_check
      _
    $region15: #{tpu_custom_call.1} parent=1 // pred_check_branch
      %52 = sbr.rel (0) target = $region17
    $region16: #{tpu_custom_call.1} parent=1 // pred_region
      %s54 = ssub.s32 2048, 2048
      %55 = vsyncadd [#allocation9], %s54
      %s56 = sshll.u32 [#allocation8], 4
      %s57 = int_to_ptr.vmem [resolvable:$true] %s56
      %62 = dma.hbm_to_vmem [thread:$0]  %s3, 2048, %s57, [#allocation9], 128, 128, 8
    $region17: #{tpu_custom_call.1} parent=1 // pred_fallthru
      _
    // Predicated region
    $region18: #{tpu_custom_call.1} parent=1 // pred_check
      _
    $region19: #{tpu_custom_call.1} parent=1 // pred_check_branch
      %64 = sbr.rel (0) target = $region21
    $region20: #{tpu_custom_call.1} parent=1 // pred_region
      _
    $region21: #{tpu_custom_call.1} parent=1 // pred_fallthru
      _
    // Predicated region
    $region22: #{tpu_custom_call.1} parent=1 // pred_check
      _
    $region23: #{tpu_custom_call.1} parent=1 // pred_check_branch
      %66 = sbr.rel (0) target = $region25
    $region24: #{tpu_custom_call.1} parent=1 // pred_region
      %s68 = ssub.s32 2048, 2048
      %69 = vsyncadd [#allocation9], %s68
      %s70 = sshll.u32 [#allocation10], 4
      %s71 = int_to_ptr.vmem [resolvable:$true] %s70
      %76 = dma.hbm_to_vmem [thread:$0]  %s5, 2048, %s71, [#allocation9], 128, 128, 8
    $region25: #{tpu_custom_call.1} parent=1 // pred_fallthru
      _
    // Predicated region
    $region26: #{tpu_custom_call.1} parent=1 // pred_check
      _
    $region27: #{tpu_custom_call.1} parent=1 // pred_check_branch
      %78 = sbr.rel (0) target = $region29
    $region28: #{tpu_custom_call.1} parent=1 // pred_region
      _
    $region29: #{tpu_custom_call.1} parent=1 // pred_fallthru
      _
    // Predicated region
    $region30: #{tpu_custom_call.1} parent=1 // pred_check
      _
    $region31: #{tpu_custom_call.1} parent=1 // pred_check_branch
      %80 = sbr.rel (0) target = $region33
    $region32: #{tpu_custom_call.1} parent=1 // pred_region
      %81 = dma.done [#allocation3], 128
    $region33: #{tpu_custom_call.1} parent=1 // pred_fallthru
      _
    // Predicated region
    $region34: #{tpu_custom_call.1} parent=1 // pred_check
      _
    $region35: #{tpu_custom_call.1} parent=1 // pred_check_branch
      %83 = sbr.rel (0) target = $region37
    $region36: #{tpu_custom_call.1} parent=1 // pred_region
      %84 = dma.done [#allocation6], 128
    $region37: #{tpu_custom_call.1} parent=1 // pred_fallthru
      _
    // Predicated region
    $region38: #{tpu_custom_call.1} parent=1 // pred_check
      _
    $region39: #{tpu_custom_call.1} parent=1 // pred_check_branch
      %86 = sbr.rel (0) target = $region41
    $region40: #{tpu_custom_call.1} parent=1 // pred_region
      %87 = dma.done [#allocation6], 2048
    $region41: #{tpu_custom_call.1} parent=1 // pred_fallthru
      _
    // Predicated region
    $region42: #{tpu_custom_call.1} parent=1 // pred_check
      _
    $region43: #{tpu_custom_call.1} parent=1 // pred_check_branch
      %89 = sbr.rel (0) target = $region45
    $region44: #{tpu_custom_call.1} parent=1 // pred_region
      %90 = dma.done [#allocation9], 2048
    $region45: #{tpu_custom_call.1} parent=1 // pred_fallthru
      _
    // Predicated region
    $region46: #{tpu_custom_call.1} parent=1 // pred_check
      _
    $region47: #{tpu_custom_call.1} parent=1 // pred_check_branch
      %92 = sbr.rel (0) target = $region49
    $region48: #{tpu_custom_call.1} parent=1 // pred_region
      %93 = dma.done [#allocation9], 2048
    $region49: #{tpu_custom_call.1} parent=1 // pred_fallthru
      _
    %v94 = vld [vmem:[#allocation2] sm:$0xff]
    %v95 = vld [vmem:[#allocation7] sm:$0xff]
    %v96 = vld [vmem:[#allocation7 + $0x8] sm:$0xff]
    %v97 = vld [vmem:[#allocation7 + $0x10] sm:$0xff]
    %v98 = vld [vmem:[#allocation7 + $0x18] sm:$0xff]
    %v99 = vld [vmem:[#allocation7 + $0x20] sm:$0xff]
    %v100 = vld [vmem:[#allocation7 + $0x28] sm:$0xff]
    %v101 = vld [vmem:[#allocation7 + $0x30] sm:$0xff]
    %v102 = vld [vmem:[#allocation7 + $0x38] sm:$0xff]
    %v103 = vld [vmem:[#allocation7 + $0x40] sm:$0xff]
    %v104 = vld [vmem:[#allocation7 + $0x48] sm:$0xff]
    %v105 = vld [vmem:[#allocation7 + $0x50] sm:$0xff]
    %v106 = vld [vmem:[#allocation7 + $0x58] sm:$0xff]
    %v107 = vld [vmem:[#allocation7 + $0x60] sm:$0xff]
    %v108 = vld [vmem:[#allocation7 + $0x68] sm:$0xff]
    %v109 = vld [vmem:[#allocation7 + $0x70] sm:$0xff]
    %v110 = vld [vmem:[#allocation7 + $0x78] sm:$0xff]
    %v111 = vld [vmem:[#allocation5] sm:$0xff]
    %v112 = vld [vmem:[#allocation8] sm:$0xff]
    %v113 = vld [vmem:[#allocation8 + $0x8] sm:$0xff]
    %v114 = vld [vmem:[#allocation8 + $0x10] sm:$0xff]
    %v115 = vld [vmem:[#allocation8 + $0x18] sm:$0xff]
    %v116 = vld [vmem:[#allocation8 + $0x20] sm:$0xff]
    %v117 = vld [vmem:[#allocation8 + $0x28] sm:$0xff]
    %v118 = vld [vmem:[#allocation8 + $0x30] sm:$0xff]
    %v119 = vld [vmem:[#allocation8 + $0x38] sm:$0xff]
    %v120 = vld [vmem:[#allocation8 + $0x40] sm:$0xff]
    %v121 = vld [vmem:[#allocation8 + $0x48] sm:$0xff]
    %v122 = vld [vmem:[#allocation8 + $0x50] sm:$0xff]
    %v123 = vld [vmem:[#allocation8 + $0x58] sm:$0xff]
    %v124 = vld [vmem:[#allocation8 + $0x60] sm:$0xff]
    %v125 = vld [vmem:[#allocation8 + $0x68] sm:$0xff]
    %v126 = vld [vmem:[#allocation8 + $0x70] sm:$0xff]
    %v127 = vld [vmem:[#allocation8 + $0x78] sm:$0xff]
    %128 = vmatprep.subr.mxu0 0.0
    %129 = vmatpush1.msra.mxu0 %v112
    %130 = vmatprep.subr.mxu0 0.0
    %131 = vmatpush1.msra.mxu0 %v113
    %132 = vmatprep.subr.mxu0 0.0
    %133 = vmatpush1.msra.mxu0 %v114
    %134 = vmatprep.subr.mxu0 0.0
    %135 = vmatpush1.msra.mxu0 %v115
    %136 = vmatprep.subr.mxu0 0.0
    %137 = vmatpush1.msra.mxu0 %v116
    %138 = vmatprep.subr.mxu0 0.0
    %139 = vmatpush1.msra.mxu0 %v117
    %140 = vmatprep.subr.mxu0 0.0
    %141 = vmatpush1.msra.mxu0 %v118
    %142 = vmatprep.subr.mxu0 0.0
    %143 = vmatpush1.msra.mxu0 %v119
    %144 = vmatprep.subr.mxu0 0.0
    %145 = vmatpush1.msra.mxu0 %v120
    %146 = vmatprep.subr.mxu0 0.0
    %147 = vmatpush1.msra.mxu0 %v121
    %148 = vmatprep.subr.mxu0 0.0
    %149 = vmatpush1.msra.mxu0 %v122
    %150 = vmatprep.subr.mxu0 0.0
    %151 = vmatpush1.msra.mxu0 %v123
    %152 = vmatprep.subr.mxu0 0.0
    %153 = vmatpush1.msra.mxu0 %v124
    %154 = vmatprep.subr.mxu0 0.0
    %155 = vmatpush1.msra.mxu0 %v125
    %156 = vmatprep.subr.mxu0 0.0
    %157 = vmatpush1.msra.mxu0 %v126
    %158 = vmatprep.subr.mxu0 0.0
    %159 = vmatpush1.msra.mxu0 %v127
    %160 = vmatprep.subr.mxu0 0.0
    %161 = vmatpush1.msra.mxu0 0.0
    %162 = vmatprep.subr.mxu0 0.0
    %163 = vmatpush1.msra.mxu0 0.0
    %164 = vmatprep.subr.mxu0 0.0
    %165 = vmatpush1.msra.mxu0 0.0
    %166 = vmatprep.subr.mxu0 0.0
    %167 = vmatpush1.msra.mxu0 0.0
    %168 = vmatprep.subr.mxu0 0.0
    %169 = vmatpush1.msra.mxu0 0.0
    %170 = vmatprep.subr.mxu0 0.0
    %171 = vmatpush1.msra.mxu0 0.0
    %172 = vmatprep.subr.mxu0 0.0
    %173 = vmatpush1.msra.mxu0 0.0
    %174 = vmatprep.subr.mxu0 0.0
    %175 = vmatpush1.msra.mxu0 0.0
    %176 = vmatprep.subr.mxu0 0.0
    %177 = vmatpush1.msra.mxu0 0.0
    %178 = vmatprep.subr.mxu0 0.0
    %179 = vmatpush1.msra.mxu0 0.0
    %180 = vmatprep.subr.mxu0 0.0
    %181 = vmatpush1.msra.mxu0 0.0
    %182 = vmatprep.subr.mxu0 0.0
    %183 = vmatpush1.msra.mxu0 0.0
    %184 = vmatprep.subr.mxu0 0.0
    %185 = vmatpush1.msra.mxu0 0.0
    %186 = vmatprep.subr.mxu0 0.0
    %187 = vmatpush1.msra.mxu0 0.0
    %188 = vmatprep.subr.mxu0 0.0
    %189 = vmatpush1.msra.mxu0 0.0
    %190 = vmatprep.subr.mxu0 0.0
    %191 = vmatpush1.msra.mxu0 0.0
    %192 = vmatprep.mubr.f32.mxu0 0.0
    %193 = vmatmul.mubr.f32.gmra.mrb[0].mxu0 %v111
    %v194 = vpop.f32.mrb[0].mxu0
    %v195 = vadd.f32 0.0, %v194
    %v196 = vpop.f32.mrb[0].mxu0
    %197 = vdwg.mxu0
    %198 = vmatprep.subr.mxu0 0.0
    %199 = vmatpush1.msra.mxu0 %v95
    %200 = vmatprep.subr.mxu0 0.0
    %201 = vmatpush1.msra.mxu0 %v96
    %202 = vmatprep.subr.mxu0 0.0
    %203 = vmatpush1.msra.mxu0 %v97
    %204 = vmatprep.subr.mxu0 0.0
    %205 = vmatpush1.msra.mxu0 %v98
    %206 = vmatprep.subr.mxu0 0.0
    %207 = vmatpush1.msra.mxu0 %v99
    %208 = vmatprep.subr.mxu0 0.0
    %209 = vmatpush1.msra.mxu0 %v100
    %210 = vmatprep.subr.mxu0 0.0
    %211 = vmatpush1.msra.mxu0 %v101
    %212 = vmatprep.subr.mxu0 0.0
    %213 = vmatpush1.msra.mxu0 %v102
    %214 = vmatprep.subr.mxu0 0.0
    %215 = vmatpush1.msra.mxu0 %v103
    %216 = vmatprep.subr.mxu0 0.0
    %217 = vmatpush1.msra.mxu0 %v104
    %218 = vmatprep.subr.mxu0 0.0
    %219 = vmatpush1.msra.mxu0 %v105
    %220 = vmatprep.subr.mxu0 0.0
    %221 = vmatpush1.msra.mxu0 %v106
    %222 = vmatprep.subr.mxu0 0.0
    %223 = vmatpush1.msra.mxu0 %v107
    %224 = vmatprep.subr.mxu0 0.0
    %225 = vmatpush1.msra.mxu0 %v108
    %226 = vmatprep.subr.mxu0 0.0
    %227 = vmatpush1.msra.mxu0 %v109
    %228 = vmatprep.subr.mxu0 0.0
    %229 = vmatpush1.msra.mxu0 %v110
    %230 = vmatprep.subr.mxu0 0.0
    %231 = vmatpush1.msra.mxu0 0.0
    %232 = vmatprep.subr.mxu0 0.0
    %233 = vmatpush1.msra.mxu0 0.0
    %234 = vmatprep.subr.mxu0 0.0
    %235 = vmatpush1.msra.mxu0 0.0
    %236 = vmatprep.subr.mxu0 0.0
    %237 = vmatpush1.msra.mxu0 0.0
    %238 = vmatprep.subr.mxu0 0.0
    %239 = vmatpush1.msra.mxu0 0.0
    %240 = vmatprep.subr.mxu0 0.0
    %241 = vmatpush1.msra.mxu0 0.0
    %242 = vmatprep.subr.mxu0 0.0
    %243 = vmatpush1.msra.mxu0 0.0
    %244 = vmatprep.subr.mxu0 0.0
    %245 = vmatpush1.msra.mxu0 0.0
    %246 = vmatprep.subr.mxu0 0.0
    %247 = vmatpush1.msra.mxu0 0.0
    %248 = vmatprep.subr.mxu0 0.0
    %249 = vmatpush1.msra.mxu0 0.0
    %250 = vmatprep.subr.mxu0 0.0
    %251 = vmatpush1.msra.mxu0 0.0
    %252 = vmatprep.subr.mxu0 0.0
    %253 = vmatpush1.msra.mxu0 0.0
    %254 = vmatprep.subr.mxu0 0.0
    %255 = vmatpush1.msra.mxu0 0.0
    %256 = vmatprep.subr.mxu0 0.0
    %257 = vmatpush1.msra.mxu0 0.0
    %258 = vmatprep.subr.mxu0 0.0
    %259 = vmatpush1.msra.mxu0 0.0
    %260 = vmatprep.subr.mxu0 0.0
    %261 = vmatpush1.msra.mxu0 0.0
    %262 = vmatprep.mubr.f32.mxu0 0.0
    %263 = vmatmul.mubr.f32.gmra.mrb[0].mxu0 %v94
    %v264 = vpop.f32.mrb[0].mxu0
    %v265 = vadd.f32 %v195, %v264
    %v266 = vpop.f32.mrb[0].mxu0
    %267 = vdwg.mxu0
    %v268 = vld [vmem:[%s4] sm:$0x1]
    %v270 = vlaneseq
    %v271 = vshrl.u32 %v270, 7
    %v272 = vsub.s32 0, %v271
    %v273 = vrot.slane %v268, %v272
    %v275 = vadd.f32 %v265, %v273
    %v276 = vtanh.pop %v275
    %v277 = vmul.f32 %v94, 0.5
    %v278 = vmul.f32 %v276, 0.5
    %v279 = vadd.f32 %v277, %v278
    %280 = vst [vmem:[#allocation11] sm:$0xff] %v279
    %v281 = vld [vmem:[#allocation10] sm:$0xff]
    %v282 = vld [vmem:[#allocation10 + $0x8] sm:$0xff]
    %v283 = vld [vmem:[#allocation10 + $0x10] sm:$0xff]
    %v284 = vld [vmem:[#allocation10 + $0x18] sm:$0xff]
    %v285 = vld [vmem:[#allocation10 + $0x20] sm:$0xff]
    %v286 = vld [vmem:[#allocation10 + $0x28] sm:$0xff]
    %v287 = vld [vmem:[#allocation10 + $0x30] sm:$0xff]
    %v288 = vld [vmem:[#allocation10 + $0x38] sm:$0xff]
    %v289 = vld [vmem:[#allocation10 + $0x40] sm:$0xff]
    %v290 = vld [vmem:[#allocation10 + $0x48] sm:$0xff]
    %v291 = vld [vmem:[#allocation10 + $0x50] sm:$0xff]
    %v292 = vld [vmem:[#allocation10 + $0x58] sm:$0xff]
    %v293 = vld [vmem:[#allocation10 + $0x60] sm:$0xff]
    %v294 = vld [vmem:[#allocation10 + $0x68] sm:$0xff]
    %v295 = vld [vmem:[#allocation10 + $0x70] sm:$0xff]
    %v296 = vld [vmem:[#allocation10 + $0x78] sm:$0xff]
    %v297 = vld [vmem:[%s6] sm:$0x1]
    %v299 = vlaneseq
    %v300 = vshrl.u32 %v299, 7
    %v301 = vsub.s32 0, %v300
    %v302 = vrot.slane %v297, %v301
    %304 = vmatprep.subr.mxu0 0.0
    %305 = vmatpush1.msra.mxu0 %v281
    %306 = vmatprep.subr.mxu0 0.0
    %307 = vmatpush1.msra.mxu0 %v282
    %308 = vmatprep.subr.mxu0 0.0
    %309 = vmatpush1.msra.mxu0 %v283
    %310 = vmatprep.subr.mxu0 0.0
    %311 = vmatpush1.msra.mxu0 %v284
    %312 = vmatprep.subr.mxu0 0.0
    %313 = vmatpush1.msra.mxu0 %v285
    %314 = vmatprep.subr.mxu0 0.0
    %315 = vmatpush1.msra.mxu0 %v286
    %316 = vmatprep.subr.mxu0 0.0
    %317 = vmatpush1.msra.mxu0 %v287
    %318 = vmatprep.subr.mxu0 0.0
    %319 = vmatpush1.msra.mxu0 %v288
    %320 = vmatprep.subr.mxu0 0.0
    %321 = vmatpush1.msra.mxu0 %v289
    %322 = vmatprep.subr.mxu0 0.0
    %323 = vmatpush1.msra.mxu0 %v290
    %324 = vmatprep.subr.mxu0 0.0
    %325 = vmatpush1.msra.mxu0 %v291
    %326 = vmatprep.subr.mxu0 0.0
    %327 = vmatpush1.msra.mxu0 %v292
    %328 = vmatprep.subr.mxu0 0.0
    %329 = vmatpush1.msra.mxu0 %v293
    %330 = vmatprep.subr.mxu0 0.0
    %331 = vmatpush1.msra.mxu0 %v294
    %332 = vmatprep.subr.mxu0 0.0
    %333 = vmatpush1.msra.mxu0 %v295
    %334 = vmatprep.subr.mxu0 0.0
    %335 = vmatpush1.msra.mxu0 %v296
    %336 = vmatprep.subr.mxu0 0.0
    %337 = vmatpush1.msra.mxu0 0.0
    %338 = vmatprep.subr.mxu0 0.0
    %339 = vmatpush1.msra.mxu0 0.0
    %340 = vmatprep.subr.mxu0 0.0
    %341 = vmatpush1.msra.mxu0 0.0
    %342 = vmatprep.subr.mxu0 0.0
    %343 = vmatpush1.msra.mxu0 0.0
    %344 = vmatprep.subr.mxu0 0.0
    %345 = vmatpush1.msra.mxu0 0.0
    %346 = vmatprep.subr.mxu0 0.0
    %347 = vmatpush1.msra.mxu0 0.0
    %348 = vmatprep.subr.mxu0 0.0
    %349 = vmatpush1.msra.mxu0 0.0
    %350 = vmatprep.subr.mxu0 0.0
    %351 = vmatpush1.msra.mxu0 0.0
    %352 = vmatprep.subr.mxu0 0.0
    %353 = vmatpush1.msra.mxu0 0.0
    %354 = vmatprep.subr.mxu0 0.0
    %355 = vmatpush1.msra.mxu0 0.0
    %356 = vmatprep.subr.mxu0 0.0
    %357 = vmatpush1.msra.mxu0 0.0
    %358 = vmatprep.subr.mxu0 0.0
    %359 = vmatpush1.msra.mxu0 0.0
    %360 = vmatprep.subr.mxu0 0.0
    %361 = vmatpush1.msra.mxu0 0.0
    %362 = vmatprep.subr.mxu0 0.0
    %363 = vmatpush1.msra.mxu0 0.0
    %364 = vmatprep.subr.mxu0 0.0
    %365 = vmatpush1.msra.mxu0 0.0
    %366 = vmatprep.subr.mxu0 0.0
    %367 = vmatpush1.msra.mxu0 0.0
    %368 = vmatprep.mubr.f32.mxu0 0.0
    %369 = vmatmul.mubr.f32.gmra.mrb[0].mxu0 %v279
    %v370 = vpop.f32.mrb[0].mxu0
    %v371 = vadd.f32 %v302, %v370
    %v372 = vpop.f32.mrb[0].mxu0
    %373 = vdwg.mxu0
    %374 = vst [vmem:[#allocation12] sm:$0xff] %v371
    // Predicated region
    $region50: #{tpu_custom_call.1} parent=1 // pred_check
      _
    $region51: #{tpu_custom_call.1} parent=1 // pred_check_branch
      %376 = sbr.rel (0) target = $region53
    $region52: #{tpu_custom_call.1} parent=1 // pred_region
      %s378 = ssub.s32 128, 128
      %379 = vsyncadd [#allocation4], %s378
      %s381 = sshll.u32 [#allocation11], 4
      %s382 = int_to_ptr.vmem [resolvable:$true] %s381
      %384 = dma.vmem_to_hbm [thread:$0]  %s382, 128, %s7, [#allocation4]
    $region53: #{tpu_custom_call.1} parent=1 // pred_fallthru
      _
    // Predicated region
    $region54: #{tpu_custom_call.1} parent=1 // pred_check
      _
    $region55: #{tpu_custom_call.1} parent=1 // pred_check_branch
      %386 = sbr.rel (0) target = $region57
    $region56: #{tpu_custom_call.1} parent=1 // pred_region
      %s388 = ssub.s32 128, 128
      %389 = vsyncadd [#allocation13], %s388
      %s391 = sshll.u32 [#allocation12], 4
      %s392 = int_to_ptr.vmem [resolvable:$true] %s391
      %394 = dma.vmem_to_hbm [thread:$0]  %s392, 128, %s8, [#allocation13]
    $region57: #{tpu_custom_call.1} parent=1 // pred_fallthru
      _
    // Predicated region
    $region58: #{tpu_custom_call.1} parent=1 // pred_check
      _
    $region59: #{tpu_custom_call.1} parent=1 // pred_check_branch
      %396 = sbr.rel (0) target = $region61
    $region60: #{tpu_custom_call.1} parent=1 // pred_region
      %397 = dma.done [#allocation4], 128
    $region61: #{tpu_custom_call.1} parent=1 // pred_fallthru
      _
    // Predicated region
    $region62: #{tpu_custom_call.1} parent=1 // pred_check
      _
    $region63: #{tpu_custom_call.1} parent=1 // pred_check_branch
      %399 = sbr.rel (0) target = $region65
    $region64: #{tpu_custom_call.1} parent=1 // pred_region
      %400 = dma.done [#allocation13], 128
    $region65: #{tpu_custom_call.1} parent=1 // pred_fallthru
      _
    %401 = vsyncpa [#allocation3], 1
    %402 = vsyncpa [#allocation6], 1
    %403 = vsyncpa [#allocation9], 1
    %404 = vsyncpa [#allocation4], 1
    %405 = vsyncpa [#allocation13], 1

</llo_original>
